<compile_context>
chip_gen: v6e
topology: v6e:2x2x1
jax: 0.10.0
libtpu: 0.0.40
codegen_flags: <defaults>
</compile_context>

<pallas_src>
import functools

import jax
import jax.numpy as jnp
from jax.experimental import pallas as pl
from jax.experimental.pallas import tpu as pltpu


# ---------------------------------------------------------------------------
# Kernel
# ---------------------------------------------------------------------------
def _layered_blend_kernel(dists_ref, colors_ref, out_ref, *, n_faces, inv_sigma,
                          sigma_is_zero, clip_inside, background):
    """Blend one (Rt, Pc) pixel tile.

    dists_ref  : (K, Rt, Pc) f32   -- masked faces already set to +inf
    colors_ref : (K, 3, Rt, Pc) bf16/f32
    out_ref    : (4, Rt, Pc) f32   -- RGBA
    """
    tile = dists_ref.shape[1:]                       # (Rt, Pc)
    occ = jnp.ones(tile, jnp.float32)                # running prod(1 - alpha)
    acc = [jnp.zeros(tile, jnp.float32) for _ in range(3)]

    # Short static unroll over faces-per-pixel: pure elementwise VPU/EUP work.
    for k in range(n_faces):
        d = dists_ref[k]
        if sigma_is_zero:
            a = (d <= 0.0).astype(jnp.float32)
        elif clip_inside:
            # exp(-clamp(d, 0) / sigma); masked faces have d = +inf -> a == 0.
            a = jnp.exp(-jnp.maximum(d, 0.0) * inv_sigma)
        else:
            # sigmoid(-d / sigma); masked faces have d = +inf -> a == 0.
            a = jax.nn.sigmoid(-d * inv_sigma)
        w = occ * a
        for ch in range(3):
            acc[ch] = acc[ch] + w * colors_ref[k, ch].astype(jnp.float32)
        occ = occ * (1.0 - a)

    # Background layer gets the residual transmittance; alpha = coverage.
    for ch in range(3):
        out_ref[ch] = acc[ch] + occ * background[ch]
    out_ref[3] = 1.0 - occ


# ---------------------------------------------------------------------------
# Wrapper
# ---------------------------------------------------------------------------
def _round_up(x, m):
    return (x + m - 1) // m * m


def _pick_row_tile(n_rows, n_cols, n_faces, color_bytes, budget_bytes):
    """Largest sublane-row tile whose double-buffered working set fits budget."""
    per_row = n_cols * (n_faces * 4 + 3 * n_faces * color_bytes + 4 * 4)
    rt = max(8, int(budget_bytes // (2 * per_row)) // 8 * 8)
    if rt >= n_rows:
        return n_rows          # full extent is always a legal block dim
    return rt


def layered_rgb_blend_pallas(colors, pix_to_face, dists, *, sigma,
                             background_color=(1.0, 1.0, 1.0), clip_inside=True,
                             color_compute_dtype=jnp.bfloat16, lane_width=1024,
                             vmem_block_budget=24 << 20):
    """Pallas version of unicorn's layered_rgb_blend.

    colors      : (N, H, W, K, 3) float  -- sampled texels ('raw' shading)
    pix_to_face : (N, H, W, K)    int    -- < 0 means no face
    dists       : (N, H, W, K)    float  -- signed distances from rasterizer
    returns     : (N, 4, H, W)    float32 (RGBA, NCHW like the PyTorch module)
    """
    colors = jnp.asarray(colors)
    dists = jnp.asarray(dists, jnp.float32)
    pix_to_face = jnp.asarray(pix_to_face)
    N, H, W, K = pix_to_face.shape
    P = N * H * W

    # Fold the pix_to_face >= 0 mask into dists (masked -> +inf -> alpha == 0)
    # so the kernel does not read the K*P int32 stream at all.
    d = jnp.where(pix_to_face >= 0, dists, jnp.inf)

    # Lay out pixels on the lane axis.  NOTE: if the fragment producer can emit
    # (K, ..., P) directly, these wrapper transposes disappear.
    d = d.reshape(P, K).T                                   # (K, P)
    c = colors.reshape(P, K, 3).transpose(1, 2, 0)          # (K, 3, P)
    c = c.astype(color_compute_dtype)                       # bf16 on the wire

    # Pixel slab (Pr, Pc): lane-dense, tiled over rows with a VMEM-sized block.
    Pc = min(lane_width, _round_up(P, 128))
    Pr = -(-P // Pc)
    Rt = _pick_row_tile(Pr, Pc, K, jnp.dtype(color_compute_dtype).itemsize,
                        vmem_block_budget)
    Pr_pad = _round_up(Pr, Rt) if Rt < Pr else Pr
    P_pad = Pr_pad * Pc

    d = jnp.pad(d, ((0, 0), (0, P_pad - P))).reshape(K, Pr_pad, Pc)
    c = jnp.pad(c, ((0, 0), (0, 0), (0, P_pad - P))).reshape(K, 3, Pr_pad, Pc)

    kernel = functools.partial(
        _layered_blend_kernel,
        n_faces=K,
        inv_sigma=(0.0 if float(sigma) == 0.0 else 1.0 / float(sigma)),
        sigma_is_zero=(float(sigma) == 0.0),
        clip_inside=bool(clip_inside),
        background=tuple(float(b) for b in background_color),
    )

    grid = (Pr_pad // Rt,)
    out = pl.pallas_call(
        kernel,
        out_shape=jax.ShapeDtypeStruct((4, Pr_pad, Pc), jnp.float32),
        grid_spec=pltpu.PrefetchScalarGridSpec(
            num_scalar_prefetch=0,
            grid=grid,
            in_specs=[
                pl.BlockSpec((K, Rt, Pc), lambda i: (0, i, 0)),
                pl.BlockSpec((K, 3, Rt, Pc), lambda i: (0, 0, i, 0)),
            ],
            out_specs=pl.BlockSpec((4, Rt, Pc), lambda i: (0, i, 0)),
        ),
        compiler_params=pltpu.CompilerParams(
            dimension_semantics=("parallel",),      # shards across v7x's 2 TCs
            vmem_limit_bytes=48 * 1024 * 1024,      # headroom on v7x's 64 MiB
        ),
    )(d, c)

    out = out.reshape(4, P_pad)[:, :P].reshape(4, N, H, W)
    return jnp.transpose(out, (1, 0, 2, 3))         # NCHW, == .permute(0,3,1,2)


# ---------------------------------------------------------------------------
# Pure-JAX reference (mirrors the PyTorch layered_rgb_blend)
# ---------------------------------------------------------------------------
def _layered_rgb_blend_reference(colors, pix_to_face, dists, *, sigma,
                                 background_color, clip_inside=True):
    N, H, W, K = pix_to_face.shape
    mask = (pix_to_face >= 0).astype(jnp.float32)
    if float(sigma) == 0.0:
        alpha = (dists <= 0).astype(jnp.float32) * mask
    elif clip_inside:
        alpha = jnp.exp(-jnp.clip(dists, 0.0, None) / sigma) * mask
    else:
        alpha = jax.nn.sigmoid(-dists / sigma) * mask
    occ = jnp.cumprod(1.0 - alpha, axis=-1)
    occ = jnp.concatenate([jnp.ones((N, H, W, 1), jnp.float32), occ], axis=-1)
    bg = jnp.asarray(background_color, jnp.float32)
    colors_ext = jnp.concatenate(
        [colors.astype(jnp.float32), jnp.broadcast_to(bg, (N, H, W, 1, 3))], axis=-2)
    alpha_ext = jnp.concatenate([alpha, jnp.ones((N, H, W, 1), jnp.float32)], axis=-1)
    rgb = (occ[..., None] * alpha_ext[..., None] * colors_ext).sum(-2)
    a = 1.0 - occ[..., -1]
    out = jnp.concatenate([rgb, a[..., None]], axis=-1)     # (N, H, W, 4)
    return jnp.transpose(out, (0, 3, 1, 2))                 # (N, 4, H, W)


# ---------------------------------------------------------------------------
# Demo / self-test
# ---------------------------------------------------------------------------
if __name__ == "__main__":
    key = jax.random.PRNGKey(0)
    N, H, W, K = 2, 16, 16, 8            # small demo shapes
    sigma = 1e-4                          # Renderer default blend_params.sigma
    background = (1.0, 1.0, 1.0)          # Renderer default background_color

    k1, k2, k3 = jax.random.split(key, 3)
    colors = jax.random.uniform(k1, (N, H, W, K, 3), jnp.float32)
    dists = jax.random.uniform(k2, (N, H, W, K), jnp.float32,
                               minval=-2e-4, maxval=6e-4)
    pix_to_face = jax.random.randint(k3, (N, H, W, K), minval=-3, maxval=50)

    out = layered_rgb_blend_pallas(colors, pix_to_face, dists, sigma=sigma,
                                   background_color=background, clip_inside=True)
    out = jax.block_until_ready(out)

    ref = _layered_rgb_blend_reference(colors, pix_to_face, dists, sigma=sigma,
                                       background_color=background,
                                       clip_inside=True)
    err = float(jnp.max(jnp.abs(out - ref)))

    assert out.shape == (N, 4, H, W), out.shape
    assert err < 3e-2, f"max abs error {err}"   # bf16-color rounding << 3e-2
    print("KERNEL_OK")
</pallas_src>

<mosaic_0001>
module attributes {stable_mosaic.version = 11 : i64} {
  func.func @_layered_blend_kernel(%arg0: i32, %arg1: memref<8x1x512xf32, #tpu.memory_space<vmem>>, %arg2: memref<8x3x1x512xbf16, #tpu.memory_space<vmem>>, %arg3: memref<4x1x512xf32, #tpu.memory_space<vmem>>) attributes {dimension_semantics = [#tpu.dimension_semantics<parallel>], iteration_bounds = array<i64: 1>, scalar_prefetch = 0 : i64, scratch_operands = 0 : i64, tpu.core_type = #tpu.core_type<tc>, window_params = [{transform_indices = @transform_0, window_bounds = array<i64: 8, 1, 512>}, {transform_indices = @transform_1, window_bounds = array<i64: 8, 3, 1, 512>}, {transform_indices = @transform_2, window_bounds = array<i64: 4, 1, 512>}]} {
    %cst = arith.constant 1.000000e+00 : f32
    %0 = vector.broadcast %cst : f32 to vector<1x512xf32>
    %cst_0 = arith.constant 0.000000e+00 : f32
    %1 = vector.broadcast %cst_0 : f32 to vector<1x512xf32>
    %cst_1 = arith.constant 0.000000e+00 : f32
    %2 = vector.broadcast %cst_1 : f32 to vector<1x512xf32>
    %cst_2 = arith.constant 0.000000e+00 : f32
    %3 = vector.broadcast %cst_2 : f32 to vector<1x512xf32>
    %c0 = arith.constant 0 : index
    %c0_3 = arith.constant 0 : index
    %c0_4 = arith.constant 0 : index
    %4 = vector.load %arg1[%c0, %c0_3, %c0_4] : memref<8x1x512xf32, #tpu.memory_space<vmem>>, vector<1x1x512xf32>
    %5 = vector.shape_cast %4 : vector<1x1x512xf32> to vector<1x512xf32>
    %cst_5 = arith.constant 0.000000e+00 : f32
    %6 = vector.broadcast %cst_5 : f32 to vector<1x512xf32>
    %7 = arith.maximumf %5, %6 : vector<1x512xf32>
    %cst_6 = arith.constant 0.000000e+00 : f32
    %8 = vector.broadcast %cst_6 : f32 to vector<1x512xf32>
    %9 = arith.subf %8, %7 : vector<1x512xf32>
    %cst_7 = arith.constant 1.000000e+04 : f32
    %10 = vector.broadcast %cst_7 : f32 to vector<1x512xf32>
    %11 = arith.mulf %9, %10 : vector<1x512xf32>
    %12 = math.exp %11 : vector<1x512xf32>
    %13 = arith.mulf %0, %12 : vector<1x512xf32>
    %c0_8 = arith.constant 0 : index
    %c0_9 = arith.constant 0 : index
    %c0_10 = arith.constant 0 : index
    %c0_11 = arith.constant 0 : index
    %14 = vector.load %arg2[%c0_8, %c0_9, %c0_10, %c0_11] : memref<8x3x1x512xbf16, #tpu.memory_space<vmem>>, vector<1x1x1x512xbf16>
    %15 = vector.shape_cast %14 : vector<1x1x1x512xbf16> to vector<1x512xbf16>
    %16 = arith.extf %15 : vector<1x512xbf16> to vector<1x512xf32>
    %17 = arith.mulf %13, %16 : vector<1x512xf32>
    %18 = arith.addf %1, %17 : vector<1x512xf32>
    %c0_12 = arith.constant 0 : index
    %c1 = arith.constant 1 : index
    %c0_13 = arith.constant 0 : index
    %c0_14 = arith.constant 0 : index
    %19 = vector.load %arg2[%c0_12, %c1, %c0_13, %c0_14] : memref<8x3x1x512xbf16, #tpu.memory_space<vmem>>, vector<1x1x1x512xbf16>
    %20 = vector.shape_cast %19 : vector<1x1x1x512xbf16> to vector<1x512xbf16>
    %21 = arith.extf %20 : vector<1x512xbf16> to vector<1x512xf32>
    %22 = arith.mulf %13, %21 : vector<1x512xf32>
    %23 = arith.addf %2, %22 : vector<1x512xf32>
    %c0_15 = arith.constant 0 : index
    %c2 = arith.constant 2 : index
    %c0_16 = arith.constant 0 : index
    %c0_17 = arith.constant 0 : index
    %24 = vector.load %arg2[%c0_15, %c2, %c0_16, %c0_17] : memref<8x3x1x512xbf16, #tpu.memory_space<vmem>>, vector<1x1x1x512xbf16>
    %25 = vector.shape_cast %24 : vector<1x1x1x512xbf16> to vector<1x512xbf16>
    %26 = arith.extf %25 : vector<1x512xbf16> to vector<1x512xf32>
    %27 = arith.mulf %13, %26 : vector<1x512xf32>
    %28 = arith.addf %3, %27 : vector<1x512xf32>
    %cst_18 = arith.constant 1.000000e+00 : f32
    %29 = vector.broadcast %cst_18 : f32 to vector<1x512xf32>
    %30 = arith.subf %29, %12 : vector<1x512xf32>
    %31 = arith.mulf %0, %30 : vector<1x512xf32>
    %c1_19 = arith.constant 1 : index
    %c0_20 = arith.constant 0 : index
    %c0_21 = arith.constant 0 : index
    %32 = vector.load %arg1[%c1_19, %c0_20, %c0_21] : memref<8x1x512xf32, #tpu.memory_space<vmem>>, vector<1x1x512xf32>
    %33 = vector.shape_cast %32 : vector<1x1x512xf32> to vector<1x512xf32>
    %cst_22 = arith.constant 0.000000e+00 : f32
    %34 = vector.broadcast %cst_22 : f32 to vector<1x512xf32>
    %35 = arith.maximumf %33, %34 : vector<1x512xf32>
    %cst_23 = arith.constant 0.000000e+00 : f32
    %36 = vector.broadcast %cst_23 : f32 to vector<1x512xf32>
    %37 = arith.subf %36, %35 : vector<1x512xf32>
    %cst_24 = arith.constant 1.000000e+04 : f32
    %38 = vector.broadcast %cst_24 : f32 to vector<1x512xf32>
    %39 = arith.mulf %37, %38 : vector<1x512xf32>
    %40 = math.exp %39 : vector<1x512xf32>
    %41 = arith.mulf %31, %40 : vector<1x512xf32>
    %c1_25 = arith.constant 1 : index
    %c0_26 = arith.constant 0 : index
    %c0_27 = arith.constant 0 : index
    %c0_28 = arith.constant 0 : index
    %42 = vector.load %arg2[%c1_25, %c0_26, %c0_27, %c0_28] : memref<8x3x1x512xbf16, #tpu.memory_space<vmem>>, vector<1x1x1x512xbf16>
    %43 = vector.shape_cast %42 : vector<1x1x1x512xbf16> to vector<1x512xbf16>
    %44 = arith.extf %43 : vector<1x512xbf16> to vector<1x512xf32>
    %45 = arith.mulf %41, %44 : vector<1x512xf32>
    %46 = arith.addf %18, %45 : vector<1x512xf32>
    %c1_29 = arith.constant 1 : index
    %c1_30 = arith.constant 1 : index
    %c0_31 = arith.constant 0 : index
    %c0_32 = arith.constant 0 : index
    %47 = vector.load %arg2[%c1_29, %c1_30, %c0_31, %c0_32] : memref<8x3x1x512xbf16, #tpu.memory_space<vmem>>, vector<1x1x1x512xbf16>
    %48 = vector.shape_cast %47 : vector<1x1x1x512xbf16> to vector<1x512xbf16>
    %49 = arith.extf %48 : vector<1x512xbf16> to vector<1x512xf32>
    %50 = arith.mulf %41, %49 : vector<1x512xf32>
    %51 = arith.addf %23, %50 : vector<1x512xf32>
    %c1_33 = arith.constant 1 : index
    %c2_34 = arith.constant 2 : index
    %c0_35 = arith.constant 0 : index
    %c0_36 = arith.constant 0 : index
    %52 = vector.load %arg2[%c1_33, %c2_34, %c0_35, %c0_36] : memref<8x3x1x512xbf16, #tpu.memory_space<vmem>>, vector<1x1x1x512xbf16>
    %53 = vector.shape_cast %52 : vector<1x1x1x512xbf16> to vector<1x512xbf16>
    %54 = arith.extf %53 : vector<1x512xbf16> to vector<1x512xf32>
    %55 = arith.mulf %41, %54 : vector<1x512xf32>
    %56 = arith.addf %28, %55 : vector<1x512xf32>
    %cst_37 = arith.constant 1.000000e+00 : f32
    %57 = vector.broadcast %cst_37 : f32 to vector<1x512xf32>
    %58 = arith.subf %57, %40 : vector<1x512xf32>
    %59 = arith.mulf %31, %58 : vector<1x512xf32>
    %c2_38 = arith.constant 2 : index
    %c0_39 = arith.constant 0 : index
    %c0_40 = arith.constant 0 : index
    %60 = vector.load %arg1[%c2_38, %c0_39, %c0_40] : memref<8x1x512xf32, #tpu.memory_space<vmem>>, vector<1x1x512xf32>
    %61 = vector.shape_cast %60 : vector<1x1x512xf32> to vector<1x512xf32>
    %cst_41 = arith.constant 0.000000e+00 : f32
    %62 = vector.broadcast %cst_41 : f32 to vector<1x512xf32>
    %63 = arith.maximumf %61, %62 : vector<1x512xf32>
    %cst_42 = arith.constant 0.000000e+00 : f32
    %64 = vector.broadcast %cst_42 : f32 to vector<1x512xf32>
    %65 = arith.subf %64, %63 : vector<1x512xf32>
    %cst_43 = arith.constant 1.000000e+04 : f32
    %66 = vector.broadcast %cst_43 : f32 to vector<1x512xf32>
    %67 = arith.mulf %65, %66 : vector<1x512xf32>
    %68 = math.exp %67 : vector<1x512xf32>
    %69 = arith.mulf %59, %68 : vector<1x512xf32>
    %c2_44 = arith.constant 2 : index
    %c0_45 = arith.constant 0 : index
    %c0_46 = arith.constant 0 : index
    %c0_47 = arith.constant 0 : index
    %70 = vector.load %arg2[%c2_44, %c0_45, %c0_46, %c0_47] : memref<8x3x1x512xbf16, #tpu.memory_space<vmem>>, vector<1x1x1x512xbf16>
    %71 = vector.shape_cast %70 : vector<1x1x1x512xbf16> to vector<1x512xbf16>
    %72 = arith.extf %71 : vector<1x512xbf16> to vector<1x512xf32>
    %73 = arith.mulf %69, %72 : vector<1x512xf32>
    %74 = arith.addf %46, %73 : vector<1x512xf32>
    %c2_48 = arith.constant 2 : index
    %c1_49 = arith.constant 1 : index
    %c0_50 = arith.constant 0 : index
    %c0_51 = arith.constant 0 : index
    %75 = vector.load %arg2[%c2_48, %c1_49, %c0_50, %c0_51] : memref<8x3x1x512xbf16, #tpu.memory_space<vmem>>, vector<1x1x1x512xbf16>
    %76 = vector.shape_cast %75 : vector<1x1x1x512xbf16> to vector<1x512xbf16>
    %77 = arith.extf %76 : vector<1x512xbf16> to vector<1x512xf32>
    %78 = arith.mulf %69, %77 : vector<1x512xf32>
    %79 = arith.addf %51, %78 : vector<1x512xf32>
    %c2_52 = arith.constant 2 : index
    %c2_53 = arith.constant 2 : index
    %c0_54 = arith.constant 0 : index
    %c0_55 = arith.constant 0 : index
    %80 = vector.load %arg2[%c2_52, %c2_53, %c0_54, %c0_55] : memref<8x3x1x512xbf16, #tpu.memory_space<vmem>>, vector<1x1x1x512xbf16>
    %81 = vector.shape_cast %80 : vector<1x1x1x512xbf16> to vector<1x512xbf16>
    %82 = arith.extf %81 : vector<1x512xbf16> to vector<1x512xf32>
    %83 = arith.mulf %69, %82 : vector<1x512xf32>
    %84 = arith.addf %56, %83 : vector<1x512xf32>
    %cst_56 = arith.constant 1.000000e+00 : f32
    %85 = vector.broadcast %cst_56 : f32 to vector<1x512xf32>
    %86 = arith.subf %85, %68 : vector<1x512xf32>
    %87 = arith.mulf %59, %86 : vector<1x512xf32>
    %c3 = arith.constant 3 : index
    %c0_57 = arith.constant 0 : index
    %c0_58 = arith.constant 0 : index
    %88 = vector.load %arg1[%c3, %c0_57, %c0_58] : memref<8x1x512xf32, #tpu.memory_space<vmem>>, vector<1x1x512xf32>
    %89 = vector.shape_cast %88 : vector<1x1x512xf32> to vector<1x512xf32>
    %cst_59 = arith.constant 0.000000e+00 : f32
    %90 = vector.broadcast %cst_59 : f32 to vector<1x512xf32>
    %91 = arith.maximumf %89, %90 : vector<1x512xf32>
    %cst_60 = arith.constant 0.000000e+00 : f32
    %92 = vector.broadcast %cst_60 : f32 to vector<1x512xf32>
    %93 = arith.subf %92, %91 : vector<1x512xf32>
    %cst_61 = arith.constant 1.000000e+04 : f32
    %94 = vector.broadcast %cst_61 : f32 to vector<1x512xf32>
    %95 = arith.mulf %93, %94 : vector<1x512xf32>
    %96 = math.exp %95 : vector<1x512xf32>
    %97 = arith.mulf %87, %96 : vector<1x512xf32>
    %c3_62 = arith.constant 3 : index
    %c0_63 = arith.constant 0 : index
    %c0_64 = arith.constant 0 : index
    %c0_65 = arith.constant 0 : index
    %98 = vector.load %arg2[%c3_62, %c0_63, %c0_64, %c0_65] : memref<8x3x1x512xbf16, #tpu.memory_space<vmem>>, vector<1x1x1x512xbf16>
    %99 = vector.shape_cast %98 : vector<1x1x1x512xbf16> to vector<1x512xbf16>
    %100 = arith.extf %99 : vector<1x512xbf16> to vector<1x512xf32>
    %101 = arith.mulf %97, %100 : vector<1x512xf32>
    %102 = arith.addf %74, %101 : vector<1x512xf32>
    %c3_66 = arith.constant 3 : index
    %c1_67 = arith.constant 1 : index
    %c0_68 = arith.constant 0 : index
    %c0_69 = arith.constant 0 : index
    %103 = vector.load %arg2[%c3_66, %c1_67, %c0_68, %c0_69] : memref<8x3x1x512xbf16, #tpu.memory_space<vmem>>, vector<1x1x1x512xbf16>
    %104 = vector.shape_cast %103 : vector<1x1x1x512xbf16> to vector<1x512xbf16>
    %105 = arith.extf %104 : vector<1x512xbf16> to vector<1x512xf32>
    %106 = arith.mulf %97, %105 : vector<1x512xf32>
    %107 = arith.addf %79, %106 : vector<1x512xf32>
    %c3_70 = arith.constant 3 : index
    %c2_71 = arith.constant 2 : index
    %c0_72 = arith.constant 0 : index
    %c0_73 = arith.constant 0 : index
    %108 = vector.load %arg2[%c3_70, %c2_71, %c0_72, %c0_73] : memref<8x3x1x512xbf16, #tpu.memory_space<vmem>>, vector<1x1x1x512xbf16>
    %109 = vector.shape_cast %108 : vector<1x1x1x512xbf16> to vector<1x512xbf16>
    %110 = arith.extf %109 : vector<1x512xbf16> to vector<1x512xf32>
    %111 = arith.mulf %97, %110 : vector<1x512xf32>
    %112 = arith.addf %84, %111 : vector<1x512xf32>
    %cst_74 = arith.constant 1.000000e+00 : f32
    %113 = vector.broadcast %cst_74 : f32 to vector<1x512xf32>
    %114 = arith.subf %113, %96 : vector<1x512xf32>
    %115 = arith.mulf %87, %114 : vector<1x512xf32>
    %c4 = arith.constant 4 : index
    %c0_75 = arith.constant 0 : index
    %c0_76 = arith.constant 0 : index
    %116 = vector.load %arg1[%c4, %c0_75, %c0_76] : memref<8x1x512xf32, #tpu.memory_space<vmem>>, vector<1x1x512xf32>
    %117 = vector.shape_cast %116 : vector<1x1x512xf32> to vector<1x512xf32>
    %cst_77 = arith.constant 0.000000e+00 : f32
    %118 = vector.broadcast %cst_77 : f32 to vector<1x512xf32>
    %119 = arith.maximumf %117, %118 : vector<1x512xf32>
    %cst_78 = arith.constant 0.000000e+00 : f32
    %120 = vector.broadcast %cst_78 : f32 to vector<1x512xf32>
    %121 = arith.subf %120, %119 : vector<1x512xf32>
    %cst_79 = arith.constant 1.000000e+04 : f32
    %122 = vector.broadcast %cst_79 : f32 to vector<1x512xf32>
    %123 = arith.mulf %121, %122 : vector<1x512xf32>
    %124 = math.exp %123 : vector<1x512xf32>
    %125 = arith.mulf %115, %124 : vector<1x512xf32>
    %c4_80 = arith.constant 4 : index
    %c0_81 = arith.constant 0 : index
    %c0_82 = arith.constant 0 : index
    %c0_83 = arith.constant 0 : index
    %126 = vector.load %arg2[%c4_80, %c0_81, %c0_82, %c0_83] : memref<8x3x1x512xbf16, #tpu.memory_space<vmem>>, vector<1x1x1x512xbf16>
    %127 = vector.shape_cast %126 : vector<1x1x1x512xbf16> to vector<1x512xbf16>
    %128 = arith.extf %127 : vector<1x512xbf16> to vector<1x512xf32>
    %129 = arith.mulf %125, %128 : vector<1x512xf32>
    %130 = arith.addf %102, %129 : vector<1x512xf32>
    %c4_84 = arith.constant 4 : index
    %c1_85 = arith.constant 1 : index
    %c0_86 = arith.constant 0 : index
    %c0_87 = arith.constant 0 : index
    %131 = vector.load %arg2[%c4_84, %c1_85, %c0_86, %c0_87] : memref<8x3x1x512xbf16, #tpu.memory_space<vmem>>, vector<1x1x1x512xbf16>
    %132 = vector.shape_cast %131 : vector<1x1x1x512xbf16> to vector<1x512xbf16>
    %133 = arith.extf %132 : vector<1x512xbf16> to vector<1x512xf32>
    %134 = arith.mulf %125, %133 : vector<1x512xf32>
    %135 = arith.addf %107, %134 : vector<1x512xf32>
    %c4_88 = arith.constant 4 : index
    %c2_89 = arith.constant 2 : index
    %c0_90 = arith.constant 0 : index
    %c0_91 = arith.constant 0 : index
    %136 = vector.load %arg2[%c4_88, %c2_89, %c0_90, %c0_91] : memref<8x3x1x512xbf16, #tpu.memory_space<vmem>>, vector<1x1x1x512xbf16>
    %137 = vector.shape_cast %136 : vector<1x1x1x512xbf16> to vector<1x512xbf16>
    %138 = arith.extf %137 : vector<1x512xbf16> to vector<1x512xf32>
    %139 = arith.mulf %125, %138 : vector<1x512xf32>
    %140 = arith.addf %112, %139 : vector<1x512xf32>
    %cst_92 = arith.constant 1.000000e+00 : f32
    %141 = vector.broadcast %cst_92 : f32 to vector<1x512xf32>
    %142 = arith.subf %141, %124 : vector<1x512xf32>
    %143 = arith.mulf %115, %142 : vector<1x512xf32>
    %c5 = arith.constant 5 : index
    %c0_93 = arith.constant 0 : index
    %c0_94 = arith.constant 0 : index
    %144 = vector.load %arg1[%c5, %c0_93, %c0_94] : memref<8x1x512xf32, #tpu.memory_space<vmem>>, vector<1x1x512xf32>
    %145 = vector.shape_cast %144 : vector<1x1x512xf32> to vector<1x512xf32>
    %cst_95 = arith.constant 0.000000e+00 : f32
    %146 = vector.broadcast %cst_95 : f32 to vector<1x512xf32>
    %147 = arith.maximumf %145, %146 : vector<1x512xf32>
    %cst_96 = arith.constant 0.000000e+00 : f32
    %148 = vector.broadcast %cst_96 : f32 to vector<1x512xf32>
    %149 = arith.subf %148, %147 : vector<1x512xf32>
    %cst_97 = arith.constant 1.000000e+04 : f32
    %150 = vector.broadcast %cst_97 : f32 to vector<1x512xf32>
    %151 = arith.mulf %149, %150 : vector<1x512xf32>
    %152 = math.exp %151 : vector<1x512xf32>
    %153 = arith.mulf %143, %152 : vector<1x512xf32>
    %c5_98 = arith.constant 5 : index
    %c0_99 = arith.constant 0 : index
    %c0_100 = arith.constant 0 : index
    %c0_101 = arith.constant 0 : index
    %154 = vector.load %arg2[%c5_98, %c0_99, %c0_100, %c0_101] : memref<8x3x1x512xbf16, #tpu.memory_space<vmem>>, vector<1x1x1x512xbf16>
    %155 = vector.shape_cast %154 : vector<1x1x1x512xbf16> to vector<1x512xbf16>
    %156 = arith.extf %155 : vector<1x512xbf16> to vector<1x512xf32>
    %157 = arith.mulf %153, %156 : vector<1x512xf32>
    %158 = arith.addf %130, %157 : vector<1x512xf32>
    %c5_102 = arith.constant 5 : index
    %c1_103 = arith.constant 1 : index
    %c0_104 = arith.constant 0 : index
    %c0_105 = arith.constant 0 : index
    %159 = vector.load %arg2[%c5_102, %c1_103, %c0_104, %c0_105] : memref<8x3x1x512xbf16, #tpu.memory_space<vmem>>, vector<1x1x1x512xbf16>
    %160 = vector.shape_cast %159 : vector<1x1x1x512xbf16> to vector<1x512xbf16>
    %161 = arith.extf %160 : vector<1x512xbf16> to vector<1x512xf32>
    %162 = arith.mulf %153, %161 : vector<1x512xf32>
    %163 = arith.addf %135, %162 : vector<1x512xf32>
    %c5_106 = arith.constant 5 : index
    %c2_107 = arith.constant 2 : index
    %c0_108 = arith.constant 0 : index
    %c0_109 = arith.constant 0 : index
    %164 = vector.load %arg2[%c5_106, %c2_107, %c0_108, %c0_109] : memref<8x3x1x512xbf16, #tpu.memory_space<vmem>>, vector<1x1x1x512xbf16>
    %165 = vector.shape_cast %164 : vector<1x1x1x512xbf16> to vector<1x512xbf16>
    %166 = arith.extf %165 : vector<1x512xbf16> to vector<1x512xf32>
    %167 = arith.mulf %153, %166 : vector<1x512xf32>
    %168 = arith.addf %140, %167 : vector<1x512xf32>
    %cst_110 = arith.constant 1.000000e+00 : f32
    %169 = vector.broadcast %cst_110 : f32 to vector<1x512xf32>
    %170 = arith.subf %169, %152 : vector<1x512xf32>
    %171 = arith.mulf %143, %170 : vector<1x512xf32>
    %c6 = arith.constant 6 : index
    %c0_111 = arith.constant 0 : index
    %c0_112 = arith.constant 0 : index
    %172 = vector.load %arg1[%c6, %c0_111, %c0_112] : memref<8x1x512xf32, #tpu.memory_space<vmem>>, vector<1x1x512xf32>
    %173 = vector.shape_cast %172 : vector<1x1x512xf32> to vector<1x512xf32>
    %cst_113 = arith.constant 0.000000e+00 : f32
    %174 = vector.broadcast %cst_113 : f32 to vector<1x512xf32>
    %175 = arith.maximumf %173, %174 : vector<1x512xf32>
    %cst_114 = arith.constant 0.000000e+00 : f32
    %176 = vector.broadcast %cst_114 : f32 to vector<1x512xf32>
    %177 = arith.subf %176, %175 : vector<1x512xf32>
    %cst_115 = arith.constant 1.000000e+04 : f32
    %178 = vector.broadcast %cst_115 : f32 to vector<1x512xf32>
    %179 = arith.mulf %177, %178 : vector<1x512xf32>
    %180 = math.exp %179 : vector<1x512xf32>
    %181 = arith.mulf %171, %180 : vector<1x512xf32>
    %c6_116 = arith.constant 6 : index
    %c0_117 = arith.constant 0 : index
    %c0_118 = arith.constant 0 : index
    %c0_119 = arith.constant 0 : index
    %182 = vector.load %arg2[%c6_116, %c0_117, %c0_118, %c0_119] : memref<8x3x1x512xbf16, #tpu.memory_space<vmem>>, vector<1x1x1x512xbf16>
    %183 = vector.shape_cast %182 : vector<1x1x1x512xbf16> to vector<1x512xbf16>
    %184 = arith.extf %183 : vector<1x512xbf16> to vector<1x512xf32>
    %185 = arith.mulf %181, %184 : vector<1x512xf32>
    %186 = arith.addf %158, %185 : vector<1x512xf32>
    %c6_120 = arith.constant 6 : index
    %c1_121 = arith.constant 1 : index
    %c0_122 = arith.constant 0 : index
    %c0_123 = arith.constant 0 : index
    %187 = vector.load %arg2[%c6_120, %c1_121, %c0_122, %c0_123] : memref<8x3x1x512xbf16, #tpu.memory_space<vmem>>, vector<1x1x1x512xbf16>
    %188 = vector.shape_cast %187 : vector<1x1x1x512xbf16> to vector<1x512xbf16>
    %189 = arith.extf %188 : vector<1x512xbf16> to vector<1x512xf32>
    %190 = arith.mulf %181, %189 : vector<1x512xf32>
    %191 = arith.addf %163, %190 : vector<1x512xf32>
    %c6_124 = arith.constant 6 : index
    %c2_125 = arith.constant 2 : index
    %c0_126 = arith.constant 0 : index
    %c0_127 = arith.constant 0 : index
    %192 = vector.load %arg2[%c6_124, %c2_125, %c0_126, %c0_127] : memref<8x3x1x512xbf16, #tpu.memory_space<vmem>>, vector<1x1x1x512xbf16>
    %193 = vector.shape_cast %192 : vector<1x1x1x512xbf16> to vector<1x512xbf16>
    %194 = arith.extf %193 : vector<1x512xbf16> to vector<1x512xf32>
    %195 = arith.mulf %181, %194 : vector<1x512xf32>
    %196 = arith.addf %168, %195 : vector<1x512xf32>
    %cst_128 = arith.constant 1.000000e+00 : f32
    %197 = vector.broadcast %cst_128 : f32 to vector<1x512xf32>
    %198 = arith.subf %197, %180 : vector<1x512xf32>
    %199 = arith.mulf %171, %198 : vector<1x512xf32>
    %c7 = arith.constant 7 : index
    %c0_129 = arith.constant 0 : index
    %c0_130 = arith.constant 0 : index
    %200 = vector.load %arg1[%c7, %c0_129, %c0_130] : memref<8x1x512xf32, #tpu.memory_space<vmem>>, vector<1x1x512xf32>
    %201 = vector.shape_cast %200 : vector<1x1x512xf32> to vector<1x512xf32>
    %cst_131 = arith.constant 0.000000e+00 : f32
    %202 = vector.broadcast %cst_131 : f32 to vector<1x512xf32>
    %203 = arith.maximumf %201, %202 : vector<1x512xf32>
    %cst_132 = arith.constant 0.000000e+00 : f32
    %204 = vector.broadcast %cst_132 : f32 to vector<1x512xf32>
    %205 = arith.subf %204, %203 : vector<1x512xf32>
    %cst_133 = arith.constant 1.000000e+04 : f32
    %206 = vector.broadcast %cst_133 : f32 to vector<1x512xf32>
    %207 = arith.mulf %205, %206 : vector<1x512xf32>
    %208 = math.exp %207 : vector<1x512xf32>
    %209 = arith.mulf %199, %208 : vector<1x512xf32>
    %c7_134 = arith.constant 7 : index
    %c0_135 = arith.constant 0 : index
    %c0_136 = arith.constant 0 : index
    %c0_137 = arith.constant 0 : index
    %210 = vector.load %arg2[%c7_134, %c0_135, %c0_136, %c0_137] : memref<8x3x1x512xbf16, #tpu.memory_space<vmem>>, vector<1x1x1x512xbf16>
    %211 = vector.shape_cast %210 : vector<1x1x1x512xbf16> to vector<1x512xbf16>
    %212 = arith.extf %211 : vector<1x512xbf16> to vector<1x512xf32>
    %213 = arith.mulf %209, %212 : vector<1x512xf32>
    %214 = arith.addf %186, %213 : vector<1x512xf32>
    %c7_138 = arith.constant 7 : index
    %c1_139 = arith.constant 1 : index
    %c0_140 = arith.constant 0 : index
    %c0_141 = arith.constant 0 : index
    %215 = vector.load %arg2[%c7_138, %c1_139, %c0_140, %c0_141] : memref<8x3x1x512xbf16, #tpu.memory_space<vmem>>, vector<1x1x1x512xbf16>
    %216 = vector.shape_cast %215 : vector<1x1x1x512xbf16> to vector<1x512xbf16>
    %217 = arith.extf %216 : vector<1x512xbf16> to vector<1x512xf32>
    %218 = arith.mulf %209, %217 : vector<1x512xf32>
    %219 = arith.addf %191, %218 : vector<1x512xf32>
    %c7_142 = arith.constant 7 : index
    %c2_143 = arith.constant 2 : index
    %c0_144 = arith.constant 0 : index
    %c0_145 = arith.constant 0 : index
    %220 = vector.load %arg2[%c7_142, %c2_143, %c0_144, %c0_145] : memref<8x3x1x512xbf16, #tpu.memory_space<vmem>>, vector<1x1x1x512xbf16>
    %221 = vector.shape_cast %220 : vector<1x1x1x512xbf16> to vector<1x512xbf16>
    %222 = arith.extf %221 : vector<1x512xbf16> to vector<1x512xf32>
    %223 = arith.mulf %209, %222 : vector<1x512xf32>
    %224 = arith.addf %196, %223 : vector<1x512xf32>
    %cst_146 = arith.constant 1.000000e+00 : f32
    %225 = vector.broadcast %cst_146 : f32 to vector<1x512xf32>
    %226 = arith.subf %225, %208 : vector<1x512xf32>
    %227 = arith.mulf %199, %226 : vector<1x512xf32>
    %cst_147 = arith.constant 1.000000e+00 : f32
    %228 = vector.broadcast %cst_147 : f32 to vector<1x512xf32>
    %229 = arith.mulf %227, %228 : vector<1x512xf32>
    %230 = arith.addf %214, %229 : vector<1x512xf32>
    %c0_148 = arith.constant 0 : index
    %c0_149 = arith.constant 0 : index
    %c0_150 = arith.constant 0 : index
    %231 = vector.load %arg3[%c0_148, %c0_149, %c0_150] : memref<4x1x512xf32, #tpu.memory_space<vmem>>, vector<1x1x512xf32>
    %232 = vector.shape_cast %231 : vector<1x1x512xf32> to vector<1x512xf32>
    %233 = vector.shape_cast %230 : vector<1x512xf32> to vector<1x1x512xf32>
    tpu.vector_store %arg3[%c0_148, %c0_149, %c0_150], %233 {strides = array<i32>} : memref<4x1x512xf32, #tpu.memory_space<vmem>>, vector<1x1x512xf32>,
    %cst_151 = arith.constant 1.000000e+00 : f32
    %234 = vector.broadcast %cst_151 : f32 to vector<1x512xf32>
    %235 = arith.mulf %227, %234 : vector<1x512xf32>
    %236 = arith.addf %219, %235 : vector<1x512xf32>
    %c1_152 = arith.constant 1 : index
    %c0_153 = arith.constant 0 : index
    %c0_154 = arith.constant 0 : index
    %237 = vector.load %arg3[%c1_152, %c0_153, %c0_154] : memref<4x1x512xf32, #tpu.memory_space<vmem>>, vector<1x1x512xf32>
    %238 = vector.shape_cast %237 : vector<1x1x512xf32> to vector<1x512xf32>
    %239 = vector.shape_cast %236 : vector<1x512xf32> to vector<1x1x512xf32>
    tpu.vector_store %arg3[%c1_152, %c0_153, %c0_154], %239 {strides = array<i32>} : memref<4x1x512xf32, #tpu.memory_space<vmem>>, vector<1x1x512xf32>,
    %cst_155 = arith.constant 1.000000e+00 : f32
    %240 = vector.broadcast %cst_155 : f32 to vector<1x512xf32>
    %241 = arith.mulf %227, %240 : vector<1x512xf32>
    %242 = arith.addf %224, %241 : vector<1x512xf32>
    %c2_156 = arith.constant 2 : index
    %c0_157 = arith.constant 0 : index
    %c0_158 = arith.constant 0 : index
    %243 = vector.load %arg3[%c2_156, %c0_157, %c0_158] : memref<4x1x512xf32, #tpu.memory_space<vmem>>, vector<1x1x512xf32>
    %244 = vector.shape_cast %243 : vector<1x1x512xf32> to vector<1x512xf32>
    %245 = vector.shape_cast %242 : vector<1x512xf32> to vector<1x1x512xf32>
    tpu.vector_store %arg3[%c2_156, %c0_157, %c0_158], %245 {strides = array<i32>} : memref<4x1x512xf32, #tpu.memory_space<vmem>>, vector<1x1x512xf32>,
    %cst_159 = arith.constant 1.000000e+00 : f32
    %246 = vector.broadcast %cst_159 : f32 to vector<1x512xf32>
    %247 = arith.subf %246, %227 : vector<1x512xf32>
    %c3_160 = arith.constant 3 : index
    %c0_161 = arith.constant 0 : index
    %c0_162 = arith.constant 0 : index
    %248 = vector.load %arg3[%c3_160, %c0_161, %c0_162] : memref<4x1x512xf32, #tpu.memory_space<vmem>>, vector<1x1x512xf32>
    %249 = vector.shape_cast %248 : vector<1x1x512xf32> to vector<1x512xf32>
    %250 = vector.shape_cast %247 : vector<1x512xf32> to vector<1x1x512xf32>
    tpu.vector_store %arg3[%c3_160, %c0_161, %c0_162], %250 {strides = array<i32>} : memref<4x1x512xf32, #tpu.memory_space<vmem>>, vector<1x1x512xf32>,
    return
  }
  func.func @transform_0(%arg0: i32) -> (i32, i32, i32) {
    %c0_i32 = arith.constant 0 : i32
    %c0_i32_0 = arith.constant 0 : i32
    %c0_i32_1 = arith.constant 0 : i32
    return %c0_i32, %arg0, %c0_i32_0 : i32, i32, i32
  }
  func.func @transform_1(%arg0: i32) -> (i32, i32, i32, i32) {
    %c0_i32 = arith.constant 0 : i32
    %c0_i32_0 = arith.constant 0 : i32
    %c0_i32_1 = arith.constant 0 : i32
    %c0_i32_2 = arith.constant 0 : i32
    return %c0_i32, %c0_i32_0, %arg0, %c0_i32_1 : i32, i32, i32, i32
  }
  func.func @transform_2(%arg0: i32) -> (i32, i32, i32) {
    %c0_i32 = arith.constant 0 : i32
    %c0_i32_0 = arith.constant 0 : i32
    %c0_i32_1 = arith.constant 0 : i32
    return %c0_i32, %arg0, %c0_i32_0 : i32, i32, i32
  }
}

</mosaic_0001>

<llo_original>
// kernel: tpu_custom_call.1
$region0: #{tpu_custom_call.1}
  #allocation0 [shape = 'u32[]', space=smem, size = 0x4, offset = 0x4, fixed_abs, tag = 'smem constant byte address 0x4 - core index']
  #allocation1 [shape = 'u32[144,128]{1,0:T(1,128)}', space=vmem, size = 0x12000, scoped, tag = 'internal scratch']
  %s0 = inlined_call_operand.vmem [shape: f32[8,1,512], index: 0, kind: input, shape index: {}]
  %s1 = inlined_call_operand.vmem [shape: bf16[8,3,1,512], index: 1, kind: input, shape index: {}]
  %s2 = inlined_call_operand.hbm [shape: f32[4,1,512], index: 2, kind: output, shape index: {}]
  %s3 = sld [smem:[#allocation0]]
  $region18: #{tpu_custom_call.1} parent=0
    _
  %s5 = ssub.s32 1, %s3
  %s6 = scalar_select 0, %s5, %s3
  $region1: #{tpu_custom_call.1} parent=0
    #allocation2 [shape = 'u8[8192]{0}', space=vmem, size = 0x2000, scoped, tag = 'output window, operand 0, single buffered']
    #allocation3 [shape = 's32[1]{0}', space=sflag, size = 0x4, scoped, tag = 'scoped memory for tpu_custom_call.1']
    %7 = vsyncpa [#allocation3], 0
    // Predicated region
    $region2: #{tpu_custom_call.1} parent=1 // pred_check
      _
    $region3: #{tpu_custom_call.1} parent=1 // pred_check_branch
      %9 = sbr.rel (0) target = $region5
    $region4: #{tpu_custom_call.1} parent=1 // pred_region
      _
    $region5: #{tpu_custom_call.1} parent=1 // pred_fallthru
      _
    // Predicated region
    $region6: #{tpu_custom_call.1} parent=1 // pred_check
      _
    $region7: #{tpu_custom_call.1} parent=1 // pred_check_branch
      %11 = sbr.rel (0) target = $region9
    $region8: #{tpu_custom_call.1} parent=1 // pred_region
      _
    $region9: #{tpu_custom_call.1} parent=1 // pred_fallthru
      _
    %v12 = vld [vmem:[%s0] sm:$0xf]
    %v13 = vmax.f32 %v12, 0.0
    %v14 = vsub.f32 0.0, %v13
    %v15 = vmul.f32 %v14, 10000.0
    %v16 = vmul.f32 %v15, 1.442695
    %v17 = vpow.pop %v16
    %v18 = vld [vmem:[%s1] sm:$0xf]
    %v19 = vunpack.c.l.bf16 %v18
    %v22 = vunpack.c.l.s4 1966171168
    %v23 = vunpack.c.0.s8 %v22
    %v24 = vlaneseq
    %v25 = vshrl.u32 %v24, 7
    %v26 = vsub.s32 %v23, %v25
    %v27 = vrot.slane %v19, %v26
    %v29 = vmul.f32 %v17, %v27
    %v30 = vadd.f32 %v29, 0.0
    %s31 = scalar_lea.vmem %s1, 4
    %v32 = vld [vmem:[%s31] sm:$0xf]
    %v33 = vunpack.c.l.bf16 %v32
    %v36 = vunpack.c.l.s4 1966171168
    %v37 = vunpack.c.0.s8 %v36
    %v38 = vlaneseq
    %v39 = vshrl.u32 %v38, 7
    %v40 = vsub.s32 %v37, %v39
    %v41 = vrot.slane %v33, %v40
    %v43 = vmul.f32 %v17, %v41
    %v44 = vadd.f32 %v43, 0.0
    %s45 = scalar_lea.vmem %s1, 8
    %v46 = vld [vmem:[%s45] sm:$0xf]
    %v47 = vunpack.c.l.bf16 %v46
    %v50 = vunpack.c.l.s4 1966171168
    %v51 = vunpack.c.0.s8 %v50
    %v52 = vlaneseq
    %v53 = vshrl.u32 %v52, 7
    %v54 = vsub.s32 %v51, %v53
    %v55 = vrot.slane %v47, %v54
    %v57 = vmul.f32 %v17, %v55
    %v58 = vadd.f32 %v57, 0.0
    %v59 = vsub.f32 1.0, %v17
    %s60 = scalar_lea.vmem %s0, 4
    %v61 = vld [vmem:[%s60] sm:$0xf]
    %v62 = vmax.f32 %v61, 0.0
    %v63 = vsub.f32 0.0, %v62
    %v64 = vmul.f32 %v63, 10000.0
    %v65 = vmul.f32 %v64, 1.442695
    %v66 = vpow.pop %v65
    %v67 = vmul.f32 %v59, %v66
    %s68 = scalar_lea.vmem %s1, 12
    %v69 = vld [vmem:[%s68] sm:$0xf]
    %v70 = vunpack.c.l.bf16 %v69
    %v73 = vunpack.c.l.s4 1966171168
    %v74 = vunpack.c.0.s8 %v73
    %v75 = vlaneseq
    %v76 = vshrl.u32 %v75, 7
    %v77 = vsub.s32 %v74, %v76
    %v78 = vrot.slane %v70, %v77
    %v80 = vmul.f32 %v67, %v78
    %v81 = vadd.f32 %v30, %v80
    %s82 = scalar_lea.vmem %s1, 16
    %v83 = vld [vmem:[%s82] sm:$0xf]
    %v84 = vunpack.c.l.bf16 %v83
    %v87 = vunpack.c.l.s4 1966171168
    %v88 = vunpack.c.0.s8 %v87
    %v89 = vlaneseq
    %v90 = vshrl.u32 %v89, 7
    %v91 = vsub.s32 %v88, %v90
    %v92 = vrot.slane %v84, %v91
    %v94 = vmul.f32 %v67, %v92
    %v95 = vadd.f32 %v44, %v94
    %s96 = scalar_lea.vmem %s1, 20
    %v97 = vld [vmem:[%s96] sm:$0xf]
    %v98 = vunpack.c.l.bf16 %v97
    %v101 = vunpack.c.l.s4 1966171168
    %v102 = vunpack.c.0.s8 %v101
    %v103 = vlaneseq
    %v104 = vshrl.u32 %v103, 7
    %v105 = vsub.s32 %v102, %v104
    %v106 = vrot.slane %v98, %v105
    %v108 = vmul.f32 %v67, %v106
    %v109 = vadd.f32 %v58, %v108
    %v110 = vsub.f32 1.0, %v66
    %v111 = vmul.f32 %v59, %v110
    %s112 = scalar_lea.vmem %s0, 8
    %v113 = vld [vmem:[%s112] sm:$0xf]
    %v114 = vmax.f32 %v113, 0.0
    %v115 = vsub.f32 0.0, %v114
    %v116 = vmul.f32 %v115, 10000.0
    %v117 = vmul.f32 %v116, 1.442695
    %v118 = vpow.pop %v117
    %v119 = vmul.f32 %v111, %v118
    %s120 = scalar_lea.vmem %s1, 24
    %v121 = vld [vmem:[%s120] sm:$0xf]
    %v122 = vunpack.c.l.bf16 %v121
    %v125 = vunpack.c.l.s4 1966171168
    %v126 = vunpack.c.0.s8 %v125
    %v127 = vlaneseq
    %v128 = vshrl.u32 %v127, 7
    %v129 = vsub.s32 %v126, %v128
    %v130 = vrot.slane %v122, %v129
    %v132 = vmul.f32 %v119, %v130
    %v133 = vadd.f32 %v81, %v132
    %s134 = scalar_lea.vmem %s1, 28
    %v135 = vld [vmem:[%s134] sm:$0xf]
    %v136 = vunpack.c.l.bf16 %v135
    %v139 = vunpack.c.l.s4 1966171168
    %v140 = vunpack.c.0.s8 %v139
    %v141 = vlaneseq
    %v142 = vshrl.u32 %v141, 7
    %v143 = vsub.s32 %v140, %v142
    %v144 = vrot.slane %v136, %v143
    %v146 = vmul.f32 %v119, %v144
    %v147 = vadd.f32 %v95, %v146
    %s148 = scalar_lea.vmem %s1, 32
    %v149 = vld [vmem:[%s148] sm:$0xf]
    %v150 = vunpack.c.l.bf16 %v149
    %v153 = vunpack.c.l.s4 1966171168
    %v154 = vunpack.c.0.s8 %v153
    %v155 = vlaneseq
    %v156 = vshrl.u32 %v155, 7
    %v157 = vsub.s32 %v154, %v156
    %v158 = vrot.slane %v150, %v157
    %v160 = vmul.f32 %v119, %v158
    %v161 = vadd.f32 %v109, %v160
    %v162 = vsub.f32 1.0, %v118
    %v163 = vmul.f32 %v111, %v162
    %s164 = scalar_lea.vmem %s0, 12
    %v165 = vld [vmem:[%s164] sm:$0xf]
    %v166 = vmax.f32 %v165, 0.0
    %v167 = vsub.f32 0.0, %v166
    %v168 = vmul.f32 %v167, 10000.0
    %v169 = vmul.f32 %v168, 1.442695
    %v170 = vpow.pop %v169
    %v171 = vmul.f32 %v163, %v170
    %s172 = scalar_lea.vmem %s1, 36
    %v173 = vld [vmem:[%s172] sm:$0xf]
    %v174 = vunpack.c.l.bf16 %v173
    %v177 = vunpack.c.l.s4 1966171168
    %v178 = vunpack.c.0.s8 %v177
    %v179 = vlaneseq
    %v180 = vshrl.u32 %v179, 7
    %v181 = vsub.s32 %v178, %v180
    %v182 = vrot.slane %v174, %v181
    %v184 = vmul.f32 %v171, %v182
    %v185 = vadd.f32 %v133, %v184
    %s186 = scalar_lea.vmem %s1, 40
    %v187 = vld [vmem:[%s186] sm:$0xf]
    %v188 = vunpack.c.l.bf16 %v187
    %v191 = vunpack.c.l.s4 1966171168
    %v192 = vunpack.c.0.s8 %v191
    %v193 = vlaneseq
    %v194 = vshrl.u32 %v193, 7
    %v195 = vsub.s32 %v192, %v194
    %v196 = vrot.slane %v188, %v195
    %v198 = vmul.f32 %v171, %v196
    %v199 = vadd.f32 %v147, %v198
    %s200 = scalar_lea.vmem %s1, 44
    %v201 = vld [vmem:[%s200] sm:$0xf]
    %v202 = vunpack.c.l.bf16 %v201
    %v205 = vunpack.c.l.s4 1966171168
    %v206 = vunpack.c.0.s8 %v205
    %v207 = vlaneseq
    %v208 = vshrl.u32 %v207, 7
    %v209 = vsub.s32 %v206, %v208
    %v210 = vrot.slane %v202, %v209
    %v212 = vmul.f32 %v171, %v210
    %v213 = vadd.f32 %v161, %v212
    %v214 = vsub.f32 1.0, %v170
    %v215 = vmul.f32 %v163, %v214
    %s216 = scalar_lea.vmem %s0, 16
    %v217 = vld [vmem:[%s216] sm:$0xf]
    %v218 = vmax.f32 %v217, 0.0
    %v219 = vsub.f32 0.0, %v218
    %v220 = vmul.f32 %v219, 10000.0
    %v221 = vmul.f32 %v220, 1.442695
    %v222 = vpow.pop %v221
    %v223 = vmul.f32 %v215, %v222
    %s224 = scalar_lea.vmem %s1, 48
    %v225 = vld [vmem:[%s224] sm:$0xf]
    %v226 = vunpack.c.l.bf16 %v225
    %v229 = vunpack.c.l.s4 1966171168
    %v230 = vunpack.c.0.s8 %v229
    %v231 = vlaneseq
    %v232 = vshrl.u32 %v231, 7
    %v233 = vsub.s32 %v230, %v232
    %v234 = vrot.slane %v226, %v233
    %v236 = vmul.f32 %v223, %v234
    %v237 = vadd.f32 %v185, %v236
    %s238 = scalar_lea.vmem %s1, 52
    %v239 = vld [vmem:[%s238] sm:$0xf]
    %v240 = vunpack.c.l.bf16 %v239
    %v243 = vunpack.c.l.s4 1966171168
    %v244 = vunpack.c.0.s8 %v243
    %v245 = vlaneseq
    %v246 = vshrl.u32 %v245, 7
    %v247 = vsub.s32 %v244, %v246
    %v248 = vrot.slane %v240, %v247
    %v250 = vmul.f32 %v223, %v248
    %v251 = vadd.f32 %v199, %v250
    %s252 = scalar_lea.vmem %s1, 56
    %v253 = vld [vmem:[%s252] sm:$0xf]
    %v254 = vunpack.c.l.bf16 %v253
    %v257 = vunpack.c.l.s4 1966171168
    %v258 = vunpack.c.0.s8 %v257
    %v259 = vlaneseq
    %v260 = vshrl.u32 %v259, 7
    %v261 = vsub.s32 %v258, %v260
    %v262 = vrot.slane %v254, %v261
    %v264 = vmul.f32 %v223, %v262
    %v265 = vadd.f32 %v213, %v264
    %v266 = vsub.f32 1.0, %v222
    %v267 = vmul.f32 %v215, %v266
    %s268 = scalar_lea.vmem %s0, 20
    %v269 = vld [vmem:[%s268] sm:$0xf]
    %v270 = vmax.f32 %v269, 0.0
    %v271 = vsub.f32 0.0, %v270
    %v272 = vmul.f32 %v271, 10000.0
    %v273 = vmul.f32 %v272, 1.442695
    %v274 = vpow.pop %v273
    %v275 = vmul.f32 %v267, %v274
    %s276 = scalar_lea.vmem %s1, 60
    %v277 = vld [vmem:[%s276] sm:$0xf]
    %v278 = vunpack.c.l.bf16 %v277
    %v281 = vunpack.c.l.s4 1966171168
    %v282 = vunpack.c.0.s8 %v281
    %v283 = vlaneseq
    %v284 = vshrl.u32 %v283, 7
    %v285 = vsub.s32 %v282, %v284
    %v286 = vrot.slane %v278, %v285
    %v288 = vmul.f32 %v275, %v286
    %v289 = vadd.f32 %v237, %v288
    %s290 = scalar_lea.vmem %s1, 64
    %v291 = vld [vmem:[%s290] sm:$0xf]
    %v292 = vunpack.c.l.bf16 %v291
    %v295 = vunpack.c.l.s4 1966171168
    %v296 = vunpack.c.0.s8 %v295
    %v297 = vlaneseq
    %v298 = vshrl.u32 %v297, 7
    %v299 = vsub.s32 %v296, %v298
    %v300 = vrot.slane %v292, %v299
    %v302 = vmul.f32 %v275, %v300
    %v303 = vadd.f32 %v251, %v302
    %s304 = scalar_lea.vmem %s1, 68
    %v305 = vld [vmem:[%s304] sm:$0xf]
    %v306 = vunpack.c.l.bf16 %v305
    %v309 = vunpack.c.l.s4 1966171168
    %v310 = vunpack.c.0.s8 %v309
    %v311 = vlaneseq
    %v312 = vshrl.u32 %v311, 7
    %v313 = vsub.s32 %v310, %v312
    %v314 = vrot.slane %v306, %v313
    %v316 = vmul.f32 %v275, %v314
    %v317 = vadd.f32 %v265, %v316
    %v318 = vsub.f32 1.0, %v274
    %v319 = vmul.f32 %v267, %v318
    %s320 = scalar_lea.vmem %s0, 24
    %v321 = vld [vmem:[%s320] sm:$0xf]
    %v322 = vmax.f32 %v321, 0.0
    %v323 = vsub.f32 0.0, %v322
    %v324 = vmul.f32 %v323, 10000.0
    %v325 = vmul.f32 %v324, 1.442695
    %v326 = vpow.pop %v325
    %v327 = vmul.f32 %v319, %v326
    %s328 = scalar_lea.vmem %s1, 72
    %v329 = vld [vmem:[%s328] sm:$0xf]
    %v330 = vunpack.c.l.bf16 %v329
    %v333 = vunpack.c.l.s4 1966171168
    %v334 = vunpack.c.0.s8 %v333
    %v335 = vlaneseq
    %v336 = vshrl.u32 %v335, 7
    %v337 = vsub.s32 %v334, %v336
    %v338 = vrot.slane %v330, %v337
    %v340 = vmul.f32 %v327, %v338
    %v341 = vadd.f32 %v289, %v340
    %s342 = scalar_lea.vmem %s1, 76
    %v343 = vld [vmem:[%s342] sm:$0xf]
    %v344 = vunpack.c.l.bf16 %v343
    %v347 = vunpack.c.l.s4 1966171168
    %v348 = vunpack.c.0.s8 %v347
    %v349 = vlaneseq
    %v350 = vshrl.u32 %v349, 7
    %v351 = vsub.s32 %v348, %v350
    %v352 = vrot.slane %v344, %v351
    %v354 = vmul.f32 %v327, %v352
    %v355 = vadd.f32 %v303, %v354
    %s356 = scalar_lea.vmem %s1, 80
    %v357 = vld [vmem:[%s356] sm:$0xf]
    %v358 = vunpack.c.l.bf16 %v357
    %v361 = vunpack.c.l.s4 1966171168
    %v362 = vunpack.c.0.s8 %v361
    %v363 = vlaneseq
    %v364 = vshrl.u32 %v363, 7
    %v365 = vsub.s32 %v362, %v364
    %v366 = vrot.slane %v358, %v365
    %v368 = vmul.f32 %v327, %v366
    %v369 = vadd.f32 %v317, %v368
    %v370 = vsub.f32 1.0, %v326
    %v371 = vmul.f32 %v319, %v370
    %s372 = scalar_lea.vmem %s0, 28
    %v373 = vld [vmem:[%s372] sm:$0xf]
    %v374 = vmax.f32 %v373, 0.0
    %v375 = vsub.f32 0.0, %v374
    %v376 = vmul.f32 %v375, 10000.0
    %v377 = vmul.f32 %v376, 1.442695
    %v378 = vpow.pop %v377
    %v379 = vmul.f32 %v371, %v378
    %s380 = scalar_lea.vmem %s1, 84
    %v381 = vld [vmem:[%s380] sm:$0xf]
    %v382 = vunpack.c.l.bf16 %v381
    %v385 = vunpack.c.l.s4 1966171168
    %v386 = vunpack.c.0.s8 %v385
    %v387 = vlaneseq
    %v388 = vshrl.u32 %v387, 7
    %v389 = vsub.s32 %v386, %v388
    %v390 = vrot.slane %v382, %v389
    %v392 = vmul.f32 %v379, %v390
    %v393 = vadd.f32 %v341, %v392
    %s394 = scalar_lea.vmem %s1, 88
    %v395 = vld [vmem:[%s394] sm:$0xf]
    %v396 = vunpack.c.l.bf16 %v395
    %v399 = vunpack.c.l.s4 1966171168
    %v400 = vunpack.c.0.s8 %v399
    %v401 = vlaneseq
    %v402 = vshrl.u32 %v401, 7
    %v403 = vsub.s32 %v400, %v402
    %v404 = vrot.slane %v396, %v403
    %v406 = vmul.f32 %v379, %v404
    %v407 = vadd.f32 %v355, %v406
    %s408 = scalar_lea.vmem %s1, 92
    %v409 = vld [vmem:[%s408] sm:$0xf]
    %v410 = vunpack.c.l.bf16 %v409
    %v413 = vunpack.c.l.s4 1966171168
    %v414 = vunpack.c.0.s8 %v413
    %v415 = vlaneseq
    %v416 = vshrl.u32 %v415, 7
    %v417 = vsub.s32 %v414, %v416
    %v418 = vrot.slane %v410, %v417
    %v420 = vmul.f32 %v379, %v418
    %v421 = vadd.f32 %v369, %v420
    %v422 = vsub.f32 1.0, %v378
    %v423 = vmul.f32 %v371, %v422
    %v424 = vadd.f32 %v393, %v423
    %v425 = vlaneseq
    %vm426 = vcmp.ge.s32.totalorder %v425, 0
    %vm427 = vcmp.lt.s32.totalorder %v425, 512
    %vm428 = vmand %vm426, %vm427
    %429 = vst.msk [vmem:[#allocation2] sm:$0xf] %vm428, %v424
    %v430 = vadd.f32 %v407, %v423
    %s431 = scalar_lea.vmem [#allocation2], 4
    %432 = vst.msk [vmem:[%s431] sm:$0xf] %vm428, %v430
    %v433 = vadd.f32 %v421, %v423
    %s434 = scalar_lea.vmem [#allocation2], 8
    %435 = vst.msk [vmem:[%s434] sm:$0xf] %vm428, %v433
    %v436 = vsub.f32 1.0, %v423
    %s437 = scalar_lea.vmem [#allocation2], 12
    %438 = vst.msk [vmem:[%s437] sm:$0xf] %vm428, %v436
    // Predicated region
    $region10: #{tpu_custom_call.1} parent=1 // pred_check
      _
    $region11: #{tpu_custom_call.1} parent=1 // pred_check_branch
      %440 = sbr.rel (0) target = $region13
    $region12: #{tpu_custom_call.1} parent=1 // pred_region
      %s442 = ssub.s32 256, 256
      %443 = vsyncadd [#allocation3], %s442
      %s444 = sshll.u32 [#allocation2], 4
      %s445 = int_to_ptr.vmem [resolvable:$true] %s444
      %450 = dma.vmem_to_hbm [thread:$0]  %s445, 256, %s2, [#allocation3], 64, 64, 4
    $region13: #{tpu_custom_call.1} parent=1 // pred_fallthru
      _
    // Predicated region
    $region14: #{tpu_custom_call.1} parent=1 // pred_check
      _
    $region15: #{tpu_custom_call.1} parent=1 // pred_check_branch
      %452 = sbr.rel (0) target = $region17
    $region16: #{tpu_custom_call.1} parent=1 // pred_region
      %453 = dma.done [#allocation3], 256
    $region17: #{tpu_custom_call.1} parent=1 // pred_fallthru
      _
    %454 = vsyncpa [#allocation3], 1

</llo_original>
